<compile_context>
chip_gen: v6e
topology: v6e:2x2x1
jax: 0.10.0
libtpu: 0.0.40
codegen_flags: <defaults>
</compile_context>

<pallas_src>
import jax
import jax.numpy as jnp
from jax.experimental import pallas as pl
from jax.experimental.pallas import tpu as pltpu


def _linear1_kernel(x_ref, w_ref, b_ref, o_ref):
    # o = x @ w + b ; the weight is pre-laid-out in the wrapper so this single MXU
    # matmul is the whole per-tile computation on every path.
    o_ref[...] = (
        jnp.dot(x_ref[...], w_ref[...], preferred_element_type=jnp.float32)
        + b_ref[0]
    ).astype(o_ref.dtype)


def _tpu_tuning():
    """(tile_bytes_target, vmem_limit_bytes, min_grid_steps) by TPU generation."""
    kind = ""
    try:
        kind = (jax.devices()[0].device_kind or "").lower()
    except Exception:
        pass
    if "v7" in kind:
        # ~3.2 TB/s HBM, 64 MiB physical VMEM, 2 TensorCores/chip.
        return 8 * 1024 * 1024, 48 * 1024 * 1024, 4
    if "v6" in kind:
        # ~1.4 TB/s HBM, 128 MiB VMEM, single TensorCore.
        return 4 * 1024 * 1024, 64 * 1024 * 1024, 3
    if "v5" in kind and ("lite" in kind or "v5e" in kind or "5e" in kind):
        # ~0.8 TB/s HBM, 128 MiB VMEM, single TensorCore.
        return 3 * 1024 * 1024, 64 * 1024 * 1024, 3
    # Unknown / megacore parts (v4, v5p): conservative tiles, enough steps for 2 cores.
    return 2 * 1024 * 1024, 32 * 1024 * 1024, 4


def _auto_rows(n_rows, bytes_per_row, row_align, tile_bytes, min_steps):
    """Largest row tile <= tile_bytes that still leaves >= min_steps grid steps."""
    target = max(row_align, tile_bytes // max(bytes_per_row, 1))
    cap = max(row_align, pl.cdiv(n_rows, min_steps))
    rows = min(target, cap)
    return pl.cdiv(rows, row_align) * row_align


def classifier_forward(x, w, b):
    """Equivalent of Classifier.forward.

    x: (B, S, D) ; w: (1, D) torch nn.Linear weight ; b: (1,) bias -> (B, S) float32.
    """
    B, S, D = x.shape
    M = B * S
    dtype = x.dtype
    itemsize = jnp.dtype(dtype).itemsize
    w = w.reshape(1, D).astype(dtype)
    b = b.reshape(1).astype(jnp.float32)

    tile_bytes, vmem_limit, min_steps = _tpu_tuning()
    compiler_params = pltpu.CompilerParams(
        dimension_semantics=("parallel",),
        vmem_limit_bytes=vmem_limit,
    )
    cost = pl.CostEstimate(
        flops=int(2 * M * D),
        transcendentals=0,
        bytes_accessed=int(M * D * itemsize + M * 4 + 128 * D * 128 * 4),
    )

    # ---------------- Path 1: fully lane-dense in/out (M % 128 == 0, small D) --------
    if M % 128 == 0 and D <= 64:
        K = 128 * D
        Ng = M // 128
        xg = x.reshape(Ng, K)                      # free reshape of contiguous rows
        # Block-diagonal replicated weight: wg[n*D + d, c] = w[d] if c == n else 0,
        # so (group of 128 rows) @ wg yields the 128 per-row outputs lane-dense.
        wg = (jnp.eye(128, dtype=dtype)[:, None, :] * w.reshape(1, D, 1)).reshape(K, 128)
        row_bytes = K * itemsize + 128 * 4         # dense input group-row + dense out row
        gt = _auto_rows(Ng, row_bytes, 8, tile_bytes, min_steps)
        out = pl.pallas_call(
            _linear1_kernel,
            out_shape=jax.ShapeDtypeStruct((Ng, 128), jnp.float32),
            grid=(pl.cdiv(Ng, gt),),               # partial last block handled by Pallas
            in_specs=[
                pl.BlockSpec((gt, K), lambda i: (i, 0)),     # dense input tile
                pl.BlockSpec((K, 128), lambda i: (0, 0)),    # resident packed weight
                pl.BlockSpec(memory_space=pltpu.SMEM),       # scalar bias
            ],
            out_specs=pl.BlockSpec((gt, 128), lambda i: (i, 0)),  # lane-dense output
            compiler_params=compiler_params,
            cost_estimate=cost,
        )(xg, wg, b)
        return out.reshape(B, S)

    # ---------------- Path 2: lane-dense input packing (128 % D == 0) ----------------
    if 128 % D == 0 and M % (128 // D) == 0:
        pack = 128 // D
        Np = M // pack
        xp = x.reshape(Np, 128)                    # free reshape: `pack` rows per lane-row
        # Block-diagonal packed weight: wp[j*D + d, c] = w[d] if c == j else 0.
        wp = (jnp.eye(pack, dtype=dtype)[:, None, :] * w.reshape(1, D, 1)).reshape(128, pack)
        # VMEM per packed row: dense 128-lane input row + lane-padded (pack->128) out row.
        row_bytes = 128 * itemsize + 128 * 4
        tp = _auto_rows(Np, row_bytes, 8, tile_bytes, min_steps)
        out = pl.pallas_call(
            _linear1_kernel,
            out_shape=jax.ShapeDtypeStruct((Np, pack), jnp.float32),
            grid=(pl.cdiv(Np, tp),),
            in_specs=[
                pl.BlockSpec((tp, 128), lambda i: (i, 0)),
                pl.BlockSpec((128, pack), lambda i: (0, 0)),
                pl.BlockSpec(memory_space=pltpu.SMEM),
            ],
            out_specs=pl.BlockSpec((tp, pack), lambda i: (i, 0)),
            compiler_params=compiler_params,
            cost_estimate=cost,
        )(xp, wp, b)
        return out.reshape(B, S)

    # ---------------- Path 3: general fallback (any M, any D), copy-free -------------
    x2d = x.reshape(M, D)
    lanes = pl.cdiv(D, 128) * 128
    row_bytes = lanes * itemsize + 128 * 4         # lane-padded input row + padded out row
    tm = _auto_rows(M, row_bytes, 8, tile_bytes, min_steps)
    out = pl.pallas_call(
        _linear1_kernel,
        out_shape=jax.ShapeDtypeStruct((M, 1), jnp.float32),
        grid=(pl.cdiv(M, tm),),
        in_specs=[
            pl.BlockSpec((tm, D), lambda i: (i, 0)),
            pl.BlockSpec((D, 1), lambda i: (0, 0)),
            pl.BlockSpec(memory_space=pltpu.SMEM),
        ],
        out_specs=pl.BlockSpec((tm, 1), lambda i: (i, 0)),
        compiler_params=compiler_params,
        cost_estimate=cost,
    )(x2d, w.reshape(D, 1), b)
    return out.reshape(B, S)


if __name__ == "__main__":
    # Shapes consistent with the module: batch=2, seq=8, dimension=32.
    B, S, D = 2, 8, 32

    key = jax.random.PRNGKey(0)
    kx, kw, kb = jax.random.split(key, 3)
    bound = 1.0 / (D ** 0.5)
    # torch nn.Linear parameter shapes: weight (1, D), bias (1,)
    w = jax.random.uniform(kw, (1, D), dtype=jnp.float32, minval=-bound, maxval=bound)
    b = jax.random.uniform(kb, (1,), dtype=jnp.float32, minval=-bound, maxval=bound)

    fwd = jax.jit(classifier_forward)

    def ref(xi):
        return (jnp.einsum("bsd,od->bso", xi, w) + b)[..., 0]

    # 1) Module-spec shape (M = 16 -> lane-dense packed-input path).
    x1 = jax.random.normal(kx, (B, S, D), dtype=jnp.float32)
    o1 = jax.block_until_ready(fwd(x1, w, b))
    assert o1.shape == (B, S)
    assert jnp.allclose(o1, ref(x1), atol=1e-4, rtol=1e-4), "mismatch (packed path)"

    # 2) Ragged M (M = 15 -> general fallback path, no padding, partial last block).
    x2 = jax.random.normal(jax.random.PRNGKey(1), (3, 5, D), dtype=jnp.float32)
    o2 = jax.block_until_ready(fwd(x2, w, b))
    assert o2.shape == (3, 5)
    assert jnp.allclose(o2, ref(x2), atol=1e-4, rtol=1e-4), "mismatch (fallback path)"

    # 3) M multiple of 128 (M = 256 -> main fully lane-dense path).
    x3 = jax.random.normal(jax.random.PRNGKey(2), (2, 128, D), dtype=jnp.float32)
    o3 = jax.block_until_ready(fwd(x3, w, b))
    assert o3.shape == (2, 128)
    assert jnp.allclose(o3, ref(x3), atol=1e-4, rtol=1e-4), "mismatch (dense path)"

    print("KERNEL_OK")
</pallas_src>

<mosaic_0001>
module attributes {stable_mosaic.version = 11 : i64} {
  func.func @_linear1_kernel(%arg0: i32, %arg1: memref<8x128xf32, #tpu.memory_space<vmem>>, %arg2: memref<128x4xf32, #tpu.memory_space<vmem>>, %arg3: memref<1xf32, #tpu.memory_space<smem>>, %arg4: memref<8x4xf32, #tpu.memory_space<vmem>>) attributes {dimension_semantics = [#tpu.dimension_semantics<parallel>], iteration_bounds = array<i64: 1>, scalar_prefetch = 0 : i64, scratch_operands = 0 : i64, tpu.core_type = #tpu.core_type<tc>, window_params = [{transform_indices = @transform_0, window_bounds = array<i64: 8, 128>}, {pipeline_mode = #tpu.pipeline_mode<synchronous>, transform_indices = @transform_1, window_bounds = array<i64: 128, 4>}, {transform_indices = @transform_2, window_bounds = array<i64: 1>}, {transform_indices = @transform_3, window_bounds = array<i64: 8, 4>}]} {
    %c0 = arith.constant 0 : index
    %c0_0 = arith.constant 0 : index
    %0 = vector.load %arg1[%c0, %c0_0] : memref<8x128xf32, #tpu.memory_space<vmem>>, vector<8x128xf32>
    %c0_1 = arith.constant 0 : index
    %c0_2 = arith.constant 0 : index
    %1 = vector.load %arg2[%c0_1, %c0_2] : memref<128x4xf32, #tpu.memory_space<vmem>>, vector<128x4xf32>
    %cst = arith.constant dense<0.000000e+00> : vector<8x4xf32>
    %2 = tpu.matmul %0, %1, %cst {dimension_numbers = #tpu.dot_dimension_numbers<[1], [0], [0], [1], [0, 0, 1, 1], [], []>} : vector<8x128xf32>, vector<128x4xf32>, vector<8x4xf32> -> vector<8x4xf32>
    %c0_3 = arith.constant 0 : index
    %3 = memref.load %arg3[%c0_3] : memref<1xf32, #tpu.memory_space<smem>>
    %4 = vector.broadcast %3 : f32 to vector<8x4xf32>
    %5 = arith.addf %2, %4 : vector<8x4xf32>
    %c0_4 = arith.constant 0 : index
    %c0_5 = arith.constant 0 : index
    %6 = vector.load %arg4[%c0_4, %c0_5] : memref<8x4xf32, #tpu.memory_space<vmem>>, vector<8x4xf32>
    tpu.vector_store %arg4[%c0_4, %c0_5], %5 {strides = array<i32>} : memref<8x4xf32, #tpu.memory_space<vmem>>, vector<8x4xf32>,
    return
  }
  func.func @transform_0(%arg0: i32) -> (i32, i32) {
    %c0_i32 = arith.constant 0 : i32
    %c0_i32_0 = arith.constant 0 : i32
    return %arg0, %c0_i32 : i32, i32
  }
  func.func @transform_1(%arg0: i32) -> (i32, i32) {
    %c0_i32 = arith.constant 0 : i32
    %c0_i32_0 = arith.constant 0 : i32
    %c0_i32_1 = arith.constant 0 : i32
    return %c0_i32, %c0_i32_0 : i32, i32
  }
  func.func @transform_2(%arg0: i32) -> i32 {
    %c0_i32 = arith.constant 0 : i32
    %c0_i32_0 = arith.constant 0 : i32
    return %c0_i32 : i32
  }
  func.func @transform_3(%arg0: i32) -> (i32, i32) {
    %c0_i32 = arith.constant 0 : i32
    %c0_i32_0 = arith.constant 0 : i32
    return %arg0, %c0_i32 : i32, i32
  }
}

</mosaic_0001>

<llo_original>
// kernel: classifier_forward.1
$region0: #{classifier_forward.1}
  #allocation0 [shape = 'u32[]', space=smem, size = 0x4, offset = 0x4, fixed_abs, tag = 'smem constant byte address 0x4 - core index']
  #allocation1 [shape = 'u32[144,128]{1,0:T(1,128)}', space=vmem, size = 0x12000, scoped, tag = 'internal scratch']
  #allocation2 [shape = 'f32[1]{0:T(128)S(6)}', space=smem, size = 0x200, scoped, tag = 'scoped memory for classifier_forward.1']
  %s0 = inlined_call_operand.vmem [shape: f32[4,128], index: 0, kind: input, shape index: {}]
  %s1 = inlined_call_operand.vmem [shape: f32[128,4], index: 1, kind: input, shape index: {}]
  %s2 = inlined_call_operand.<no memory space> [shape: f32[1], index: 2, kind: input, shape index: {}]
  %s3 = inlined_call_operand.vmem [shape: f32[4,4], index: 3, kind: output, shape index: {}]
  %s4 = sld [smem:[#allocation0]]
  $region52: #{classifier_forward.1} parent=0
    _
  %s6 = ssub.s32 1, %s4
  %s7 = scalar_select 0, %s6, %s4
  %8 = sst [smem:[#allocation2]] %s2
  $region1: #{classifier_forward.1} parent=0
    #allocation3 [shape = 'u8[4096]{0}', space=vmem, size = 0x1000, scoped, tag = 'output window, operand 0, single buffered']
    // Predicated region
    $region2: #{classifier_forward.1} parent=1 // pred_check
      _
    $region3: #{classifier_forward.1} parent=1 // pred_check_branch
      %10 = sbr.rel (0) target = $region5
    $region4: #{classifier_forward.1} parent=1 // pred_region
      _
    $region5: #{classifier_forward.1} parent=1 // pred_fallthru
      _
    // Predicated region
    $region6: #{classifier_forward.1} parent=1 // pred_check
      _
    $region7: #{classifier_forward.1} parent=1 // pred_check_branch
      %12 = sbr.rel (0) target = $region9
    $region8: #{classifier_forward.1} parent=1 // pred_region
      _
    $region9: #{classifier_forward.1} parent=1 // pred_fallthru
      _
    // Predicated region
    $region10: #{classifier_forward.1} parent=1 // pred_check
      _
    $region11: #{classifier_forward.1} parent=1 // pred_check_branch
      %14 = sbr.rel (0) target = $region13
    $region12: #{classifier_forward.1} parent=1 // pred_region
      _
    $region13: #{classifier_forward.1} parent=1 // pred_fallthru
      _
    %v15 = vld [vmem:[%s0] sm:$0xff]
    %v16 = vld [vmem:[%s1] sm:$0xff]
    %v17 = vld [vmem:[%s1 + $0x8] sm:$0xff]
    %v18 = vld [vmem:[%s1 + $0x10] sm:$0xff]
    %v19 = vld [vmem:[%s1 + $0x18] sm:$0xff]
    %v20 = vld [vmem:[%s1 + $0x20] sm:$0xff]
    %v21 = vld [vmem:[%s1 + $0x28] sm:$0xff]
    %v22 = vld [vmem:[%s1 + $0x30] sm:$0xff]
    %v23 = vld [vmem:[%s1 + $0x38] sm:$0xff]
    %v24 = vld [vmem:[%s1 + $0x40] sm:$0xff]
    %v25 = vld [vmem:[%s1 + $0x48] sm:$0xff]
    %v26 = vld [vmem:[%s1 + $0x50] sm:$0xff]
    %v27 = vld [vmem:[%s1 + $0x58] sm:$0xff]
    %v28 = vld [vmem:[%s1 + $0x60] sm:$0xff]
    %v29 = vld [vmem:[%s1 + $0x68] sm:$0xff]
    %v30 = vld [vmem:[%s1 + $0x70] sm:$0xff]
    %v31 = vld [vmem:[%s1 + $0x78] sm:$0xff]
    %s32 = sld [smem:[#allocation2]]
    %v33 = vstv %s32
    %34 = vmatprep.subr.mxu0 0.0
    %35 = vmatpush1.msra.mxu0 %v31
    %36 = vmatprep.subr.mxu0 0.0
    %37 = vmatpush1.msra.mxu0 %v30
    %38 = vmatprep.subr.mxu0 0.0
    %39 = vmatpush1.msra.mxu0 %v29
    %40 = vmatprep.subr.mxu0 0.0
    %41 = vmatpush1.msra.mxu0 %v28
    %42 = vmatprep.subr.mxu0 0.0
    %43 = vmatpush1.msra.mxu0 %v27
    %44 = vmatprep.subr.mxu0 0.0
    %45 = vmatpush1.msra.mxu0 %v26
    %46 = vmatprep.subr.mxu0 0.0
    %47 = vmatpush1.msra.mxu0 %v25
    %48 = vmatprep.subr.mxu0 0.0
    %49 = vmatpush1.msra.mxu0 %v24
    %50 = vmatprep.subr.mxu0 0.0
    %51 = vmatpush1.msra.mxu0 %v23
    %52 = vmatprep.subr.mxu0 0.0
    %53 = vmatpush1.msra.mxu0 %v22
    %54 = vmatprep.subr.mxu0 0.0
    %55 = vmatpush1.msra.mxu0 %v21
    %56 = vmatprep.subr.mxu0 0.0
    %57 = vmatpush1.msra.mxu0 %v20
    %58 = vmatprep.subr.mxu0 0.0
    %59 = vmatpush1.msra.mxu0 %v19
    %60 = vmatprep.subr.mxu0 0.0
    %61 = vmatpush1.msra.mxu0 %v18
    %62 = vmatprep.subr.mxu0 0.0
    %63 = vmatpush1.msra.mxu0 %v17
    %64 = vmatprep.subr.mxu0 0.0
    %65 = vmatpush1.msra.mxu0 %v16
    %66 = vmatprep.subr.mxu0 0.0
    %67 = vmatpush2.msra.mxu0 0.0
    %68 = vmatprep.subr.mxu0 0.0
    %69 = vmatpush2.msra.mxu0 0.0
    %70 = vmatprep.subr.mxu0 0.0
    %71 = vmatpush2.msra.mxu0 0.0
    %72 = vmatprep.subr.mxu0 0.0
    %73 = vmatpush2.msra.mxu0 0.0
    %74 = vmatprep.subr.mxu0 0.0
    %75 = vmatpush2.msra.mxu0 0.0
    %76 = vmatprep.subr.mxu0 0.0
    %77 = vmatpush2.msra.mxu0 0.0
    %78 = vmatprep.subr.mxu0 0.0
    %79 = vmatpush2.msra.mxu0 0.0
    %80 = vmatprep.subr.mxu0 0.0
    %81 = vmatpush2.msra.mxu0 0.0
    %82 = vmatprep.subr.mxu0 0.0
    %83 = vmatpush2.msra.mxu0 0.0
    %84 = vmatprep.subr.mxu0 0.0
    %85 = vmatpush2.msra.mxu0 0.0
    %86 = vmatprep.subr.mxu0 0.0
    %87 = vmatpush2.msra.mxu0 0.0
    %88 = vmatprep.subr.mxu0 0.0
    %89 = vmatpush2.msra.mxu0 0.0
    %90 = vmatprep.subr.mxu0 0.0
    %91 = vmatpush2.msra.mxu0 0.0
    %92 = vmatprep.subr.mxu0 0.0
    %93 = vmatpush2.msra.mxu0 0.0
    %94 = vmatprep.subr.mxu0 0.0
    %95 = vmatpush2.msra.mxu0 0.0
    %96 = vmatprep.subr.mxu0 0.0
    %97 = vmatpush2.msra.mxu0 0.0
    %98 = vmatprep.mubr.f32.mxu0 0.0
    %99 = vmatmul.mubr.f32.gmra.mxu0 %v15
    %v100 = vpop.f32.mrf.mxu0
    %v101 = vadd.f32 %v33, %v100
    %v102 = vpop.f32.mrf.mxu0
    %103 = vdwg.mxu0
    %vm104 = vcmask 31744
    %105 = vst.msk [vmem:[#allocation3] sm:$0xff] %vm104, %v101
    // Predicated region
    $region14: #{classifier_forward.1} parent=1 // pred_check
      _
    $region15: #{classifier_forward.1} parent=1 // pred_check_branch
      %107 = sbr.rel (0) target = $region17
    $region16: #{classifier_forward.1} parent=1 // pred_region
      // Predicated region
      $region18: #{classifier_forward.1} parent=16 // pred_check
        _
      $region19: #{classifier_forward.1} parent=16 // pred_check_branch
        %109 = sbr.rel (0) target = $region21
      $region20: #{classifier_forward.1} parent=16 // pred_region
        // Predicated region
        $region22: #{classifier_forward.1} parent=20 // pred_check
          _
        $region23: #{classifier_forward.1} parent=20 // pred_check_branch
          %111 = sbr.rel target = $region25
        $region24: #{classifier_forward.1} parent=20 // pred_region
          // Predicated region
          $region37: #{classifier_forward.1} parent=24 // pred_check
            _
          $region38: #{classifier_forward.1} parent=24 // pred_check_branch
            %127 = sbr.rel (0) target = $region40
          $region39: #{classifier_forward.1} parent=24 // pred_region
            %s129 = ssub.s32 16, 1
            loop: start=0, step=1, limit=1
            $region41: #{classifier_forward.1} parent=39 // loop_pre_header
              _
            $region42: #{classifier_forward.1} parent=39 // loop_header
              %s131 = sphi 0, %s135
              %p132 = scmp.ge.s32.totalorder %s131, 1
              %s136 = sphi [#allocation3], [#allocation3]
              %s137 = sphi %s3, %s3
            $region43: #{classifier_forward.1} parent=39 // loop_header_branch
              %134 = sbr.rel (%p132) target = $region47
            $region44: #{classifier_forward.1} parent=39 // loop_body
              %v138 = vld [vmem:[%s136] sm:%s129]
              %139 = vst [vmem:[%s137] sm:%s129] %v138
            $region45: #{classifier_forward.1} parent=39 // loop_footer
              %s135 = sadd.s32 1, %s131
            $region46: #{classifier_forward.1} parent=39 // loop_footer_branch
              %130 = sbr.rel target = $region42
            $region47: #{classifier_forward.1} parent=39 // loop_exit
              _
          $region40: #{classifier_forward.1} parent=24 // pred_fallthru
            _
        $region25: #{classifier_forward.1} parent=20 // pred_fallthru
          _
        // Predicated region
        $region26: #{classifier_forward.1} parent=20 // pred_check
          _
        $region27: #{classifier_forward.1} parent=20 // pred_check_branch
          %113 = sbr.rel (0) target = $region29
        $region28: #{classifier_forward.1} parent=20 // pred_region
          %s115 = ssub.s32 16, 1
          loop: start=0, step=1, limit=1
          $region30: #{classifier_forward.1} parent=28 // loop_pre_header
            _
          $region31: #{classifier_forward.1} parent=28 // loop_header
            %s117 = sphi 0, %s121
            %p118 = scmp.ge.s32.totalorder %s117, 1
            %s122 = sphi [#allocation3], [#allocation3]
            %s123 = sphi %s3, %s3
          $region32: #{classifier_forward.1} parent=28 // loop_header_branch
            %120 = sbr.rel (%p118) target = $region36
          $region33: #{classifier_forward.1} parent=28 // loop_body
            %v124 = vld [vmem:[%s122] sm:%s115]
            %125 = vst [vmem:[%s123] sm:%s115] %v124
          $region34: #{classifier_forward.1} parent=28 // loop_footer
            %s121 = sadd.s32 1, %s117
          $region35: #{classifier_forward.1} parent=28 // loop_footer_branch
            %116 = sbr.rel target = $region31
          $region36: #{classifier_forward.1} parent=28 // loop_exit
            _
        $region29: #{classifier_forward.1} parent=20 // pred_fallthru
          _
      $region21: #{classifier_forward.1} parent=16 // pred_fallthru
        _
      %140 = vnop
    $region17: #{classifier_forward.1} parent=1 // pred_fallthru
      _
    // Predicated region
    $region48: #{classifier_forward.1} parent=1 // pred_check
      _
    $region49: #{classifier_forward.1} parent=1 // pred_check_branch
      %142 = sbr.rel (0) target = $region51
    $region50: #{classifier_forward.1} parent=1 // pred_region
      _
    $region51: #{classifier_forward.1} parent=1 // pred_fallthru
      _

</llo_original>
